<compile_context>
chip_gen: v6e
topology: v6e:2x2x1
jax: 0.10.0
libtpu: 0.0.40
codegen_flags: <defaults>
</compile_context>

<pallas_src>
import numpy as np
import jax
import jax.numpy as jnp
from jax.experimental import pallas as pl
from jax.experimental.pallas import tpu as pltpu


def _round_up(x, m):
    return (x + m - 1) // m * m


# ----------------------------- Pallas propagation kernel -----------------------------

def _make_prop_kernel(num_steps, num_blocks, e_pad):
    """All T propagation steps for one row tile, fully inside the kernel.

    init_ref: (ROWS, E_pad) f32            initial one-hot memories
    ops_ref : (E_pad, NB*E_pad) bf16       all operators (fwd + pre-transposed reverse)
                                           concatenated along lanes -> one matmul / step
    attn_ref: (T, ROWS, NB+1) f32          per-step softmax attention (fully resident)
    out_ref : (ROWS, E_pad) f32            memory state (lives in VMEM across steps)
    """
    def kernel(init_ref, ops_ref, attn_ref, out_ref):
        out_ref[...] = init_ref[...]
        for t in range(num_steps):                         # T is small & static: unrolled
            mem = out_ref[...]                             # (ROWS, E_pad) f32
            attn_t = attn_ref[t]                           # (ROWS, NB+1) f32
            # One wide MXU matmul per step (f32 accumulation).
            prod = jnp.dot(mem.astype(jnp.bfloat16), ops_ref[...],
                           preferred_element_type=jnp.float32)   # (ROWS, NB*E_pad)
            # self / identity term (last attention column)
            acc = mem * attn_t[:, num_blocks:num_blocks + 1]
            for k in range(num_blocks):                    # 128-aligned lane slices: cheap
                acc = acc + prod[:, k * e_pad:(k + 1) * e_pad] * attn_t[:, k:k + 1]
            norm = jnp.maximum(1e-20, jnp.sum(acc, axis=1, keepdims=True))
            out_ref[...] = acc / norm                      # exact divide (f32 parity)
    return kernel


def propagate_all_steps(init_mem, ops_cat_bf16, attn_all):
    """Run all T propagation steps for all ranks (rows stacked) in one pallas_call.

    init_mem : (RB_pad, E_pad) f32
    ops_cat  : (E_pad, NB*E_pad) bf16  -- NB = num_operators column blocks
    attn_all : (T, RB_pad, NB+1) f32
    """
    RB_pad, E_pad = init_mem.shape
    T, _, kp1 = attn_all.shape
    num_blocks = ops_cat_bf16.shape[1] // E_pad
    assert num_blocks == kp1 - 1

    # One big row tile so the MXU M dimension is full; split only for very large RB.
    # TODO(synk): on v7x use two row tiles (ROW_TILE = RB_pad // 2) so the "parallel"
    # axis shards across the 2 TensorCores (megacore).
    ROW_TILE = RB_pad if RB_pad <= 256 else 256
    RB_new = _round_up(RB_pad, ROW_TILE)
    if RB_new != RB_pad:
        init_mem = jnp.zeros((RB_new, E_pad), init_mem.dtype).at[:RB_pad].set(init_mem)
        attn_all = jnp.zeros((T, RB_new, kp1), attn_all.dtype).at[:, :RB_pad].set(attn_all)
        RB_pad = RB_new
    num_row_tiles = RB_pad // ROW_TILE

    # VMEM budget: blocked inputs may be double-buffered by the pipeline, so count 2x.
    # TODO(synk): single-buffer / column-tile the operator slab for very large E.
    bytes_needed = (
        2 * ops_cat_bf16.size * ops_cat_bf16.dtype.itemsize    # resident ops (x2 buffers)
        + 2 * T * ROW_TILE * kp1 * 4                            # resident attention
        + 4 * ROW_TILE * E_pad * 4                              # init + out blocks
        + 2 * ROW_TILE * (num_blocks + 2) * E_pad * 4)          # matmul result + acc work
    vmem_limit = int(min(96 * 2**20, max(4 * 2**20, 2 * bytes_needed)))

    return pl.pallas_call(
        _make_prop_kernel(T, num_blocks, E_pad),
        out_shape=jax.ShapeDtypeStruct((RB_pad, E_pad), jnp.float32),
        grid_spec=pltpu.PrefetchScalarGridSpec(
            num_scalar_prefetch=0,
            grid=(num_row_tiles,),
            in_specs=[
                pl.BlockSpec((ROW_TILE, E_pad), lambda i: (i, 0)),
                # constant block index -> operators DMA'd from HBM once, then VMEM-resident
                pl.BlockSpec((E_pad, num_blocks * E_pad), lambda i: (0, 0)),
                # attention fully resident for the tile (all T steps at once)
                pl.BlockSpec((T, ROW_TILE, kp1), lambda i: (0, i, 0)),
            ],
            out_specs=pl.BlockSpec((ROW_TILE, E_pad), lambda i: (i, 0)),
        ),
        compiler_params=pltpu.CompilerParams(
            dimension_semantics=("parallel",),
            vmem_limit_bytes=vmem_limit),
    )(init_mem, ops_cat_bf16, attn_all)


# ----------------------------- plain-JAX glue (LSTMs, heads, params) -----------------------------
# TODO(synk): bidirectional LSTM recurrence (tiny sequential prologue) and the
# sparse->dense adjacency scatter stay in plain JAX; the tiny linear+softmax heads are
# left to XLA per the performance review (pure dispatch overhead as separate kernels).

def init_lstm_params(key, input_size, hidden_size):
    k = 1.0 / np.sqrt(hidden_size)
    keys = jax.random.split(key, 8)

    def u(kk, shape):
        return jax.random.uniform(kk, shape, jnp.float32, -k, k)

    return {
        'w_ih_f': u(keys[0], (4 * hidden_size, input_size)),
        'w_hh_f': u(keys[1], (4 * hidden_size, hidden_size)),
        'b_ih_f': u(keys[2], (4 * hidden_size,)),
        'b_hh_f': u(keys[3], (4 * hidden_size,)),
        'w_ih_b': u(keys[4], (4 * hidden_size, input_size)),
        'w_hh_b': u(keys[5], (4 * hidden_size, hidden_size)),
        'b_ih_b': u(keys[6], (4 * hidden_size,)),
        'b_hh_b': u(keys[7], (4 * hidden_size,)),
    }


def _lstm_scan(x_seq, w_ih, w_hh, b_ih, b_hh):
    T, N, _ = x_seq.shape
    H = w_hh.shape[1]

    def step(carry, x):
        h, c = carry
        gates = x @ w_ih.T + b_ih + h @ w_hh.T + b_hh
        i, f, g, o = jnp.split(gates, 4, axis=-1)
        i = jax.nn.sigmoid(i)
        f = jax.nn.sigmoid(f)
        g = jnp.tanh(g)
        o = jax.nn.sigmoid(o)
        c = f * c + i * g
        h = o * jnp.tanh(c)
        return (h, c), h

    init = (jnp.zeros((N, H), jnp.float32), jnp.zeros((N, H), jnp.float32))
    (hT, _), hs = jax.lax.scan(step, init, x_seq)
    return hs, hT


def bilstm(x_seq, p):
    """PyTorch-style single-layer bidirectional LSTM (seq-first layout)."""
    hs_f, hT_f = _lstm_scan(x_seq, p['w_ih_f'], p['w_hh_f'], p['b_ih_f'], p['b_hh_f'])
    hs_b_rev, hT_b = _lstm_scan(x_seq[::-1], p['w_ih_b'], p['w_hh_b'], p['b_ih_b'], p['b_hh_b'])
    hs_b = hs_b_rev[::-1]
    out = jnp.concatenate([hs_f, hs_b], axis=-1)   # (T, N, 2H)
    h_n = jnp.stack([hT_f, hT_b], axis=0)          # (2, N, H)
    return out, h_n


class RuleMinerPallas:
    def __init__(self, key, rank, num_steps, num_entities, num_operators, entity_degrees,
                 query_include_reverse=True, entity_embedding_dim=32, query_embedding_dim=32,
                 entity_rnn_hidden_size=32, query_rnn_hidden_size=32):
        self.rank = rank
        self.num_steps = num_steps
        self.num_entities = num_entities
        self.num_operators = num_operators
        self.query_include_reverse = query_include_reverse
        self.entity_degrees = jnp.asarray(entity_degrees, jnp.int32)

        ks = jax.random.split(key, 7 + rank)
        # embeddings (nn.Embedding default: N(0, 1)); padding row zeroed
        self.query_embedding = jax.random.normal(
            ks[0], (num_operators, query_embedding_dim), jnp.float32)
        ent_emb = jax.random.normal(
            ks[1], (num_operators + 1, entity_embedding_dim), jnp.float32)
        self.entity_embedding = ent_emb.at[num_operators].set(0.0)  # padding_idx

        # linear heads (stored as (in, out) for x @ w)
        kq = 1.0 / np.sqrt(2 * query_rnn_hidden_size)
        self.query_linear_w = jax.random.uniform(
            ks[2], (2 * query_rnn_hidden_size, num_operators + 1), jnp.float32, -kq, kq)
        self.query_linear_b = jax.random.uniform(
            ks[3], (1, num_operators + 1), jnp.float32, -kq, kq)
        ke = 1.0 / np.sqrt(2 * entity_rnn_hidden_size)
        self.entity_linear_w = jax.random.uniform(
            ks[4], (2 * entity_rnn_hidden_size, num_operators), jnp.float32, -ke, ke)
        self.entity_linear_b = jax.random.uniform(
            ks[5], (1, num_operators), jnp.float32, -ke, ke)

        # RNNs
        self.entity_rnn_params = init_lstm_params(
            ks[6], entity_embedding_dim, entity_rnn_hidden_size)
        self.query_rnn_params = [
            init_lstm_params(ks[7 + r], query_embedding_dim, query_rnn_hidden_size)
            for r in range(rank)
        ]

    # ---- plain-JAX prologue shared by the Pallas path and the f32 reference path ----
    def _prepare_inputs(self, queries, heads, facts_triplets):
        T, B = self.num_steps, queries.shape[0]
        K, E, R = self.num_operators, self.num_entities, self.rank
        E_pad = _round_up(max(E, 128), 128)
        RB = R * B
        RB_pad = _round_up(RB, 8)

        # query attention over operators (tiny softmax head left to XLA)
        q = jnp.broadcast_to(queries[None, :], (T, B))                  # (T, B)
        query_embed = self.query_embedding[q]                           # (T, B, Dq)
        feats = []
        for r in range(R):
            rnn_out, _ = bilstm(query_embed, self.query_rnn_params[r])   # (T, B, 2Hq)
            feats.append(rnn_out.reshape(T * B, -1))
        feats = jnp.concatenate(feats, axis=0)                          # (R*T*B, 2Hq)
        attn = jax.nn.softmax(feats @ self.query_linear_w + self.query_linear_b, axis=-1)
        attn = attn.reshape(R, T, B, K + 1)
        attn_all = jnp.transpose(attn, (1, 0, 2, 3)).reshape(T, RB, K + 1)
        attn_all = jnp.zeros((T, RB_pad, K + 1), jnp.float32).at[:, :RB].set(attn_all)

        # entity degree attention
        ent_embed = self.entity_embedding[self.entity_degrees]          # (E, D, De)
        ent_seq = jnp.transpose(ent_embed, (1, 0, 2))                    # (D, E, De)
        _, h_n = bilstm(ent_seq, self.entity_rnn_params)                 # (2, E, He)
        ent_feat = jnp.concatenate([h_n[0], h_n[1]], axis=-1)            # (E, 2He)
        entity_attention = jax.nn.softmax(
            ent_feat @ self.entity_linear_w + self.entity_linear_b, axis=-1)   # (E, K)

        # DegreEmbed operators (scatter; duplicates sum, as torch.sparse uncoalesced)
        rel = facts_triplets[:, 0]
        head = facts_triplets[:, 1]
        tail = facts_triplets[:, 2]
        vals = entity_attention[head, rel]
        if self.query_include_reverse:
            k_half = K // 2
            keep = rel < k_half                 # facts with rel >= K/2 are unused (as in torch)
            vals = jnp.where(keep, vals, 0.0)
            rel_c = jnp.where(keep, rel, 0)
            ops_fwd = jnp.zeros((k_half, E_pad, E_pad),
                                jnp.float32).at[rel_c, head, tail].add(vals)
            # hoist the reverse (M_k^T) operators once, outside the step loop
            ops_all = jnp.concatenate([ops_fwd, jnp.transpose(ops_fwd, (0, 2, 1))], axis=0)
        else:
            ops_all = jnp.zeros((K, E_pad, E_pad),
                                jnp.float32).at[rel, head, tail].add(vals)
        # lay the operators side by side along lanes: column block k == ops_all[k]
        nb = ops_all.shape[0]
        ops_cat = jnp.transpose(ops_all, (1, 0, 2)).reshape(E_pad, nb * E_pad)

        one_hot = jax.nn.one_hot(heads, E_pad, dtype=jnp.float32)        # (B, E_pad)
        init_mem = jnp.broadcast_to(one_hot[None], (R, B, E_pad)).reshape(RB, E_pad)
        init_mem = jnp.zeros((RB_pad, E_pad), jnp.float32).at[:RB].set(init_mem)

        return init_mem, ops_cat, attn_all, (R, B, E, E_pad, RB)

    def forward(self, queries, heads, facts_triplets):
        init_mem, ops_cat, attn_all, (R, B, E, E_pad, RB) = self._prepare_inputs(
            queries, heads, facts_triplets)
        # bf16 operator stream, f32 MXU accumulation (deterministic small drift vs f32)
        out = propagate_all_steps(init_mem, ops_cat.astype(jnp.bfloat16), attn_all)
        return out[:RB].reshape(R, B, E_pad).sum(axis=0)[:, :E]          # sum over ranks

    def forward_reference(self, queries, heads, facts_triplets):
        """Plain-JAX f32 propagation (no Pallas, no bf16) for tolerance checking."""
        init_mem, ops_cat, attn_all, (R, B, E, E_pad, RB) = self._prepare_inputs(
            queries, heads, facts_triplets)
        T = attn_all.shape[0]
        nb = attn_all.shape[-1] - 1
        mem = init_mem
        for t in range(T):
            a = attn_all[t]
            prod = mem @ ops_cat
            acc = mem * a[:, nb:nb + 1]
            for k in range(nb):
                acc = acc + prod[:, k * E_pad:(k + 1) * E_pad] * a[:, k:k + 1]
            norm = jnp.maximum(1e-20, jnp.sum(acc, axis=1, keepdims=True))
            mem = acc / norm
        return mem[:RB].reshape(R, B, E_pad).sum(axis=0)[:, :E]


# ----------------------------- demo -----------------------------

if __name__ == "__main__":
    key = jax.random.PRNGKey(0)
    rank, num_steps = 2, 3
    num_entities, num_operators = 64, 4
    batch, max_degree, num_facts = 8, 6, 60

    k_deg, k_rel, k_hf, k_tf, k_q, k_h, k_model = jax.random.split(key, 7)

    # entity_degrees: relation type of incident edges, padded with index == num_operators
    entity_degrees = jax.random.randint(
        k_deg, (num_entities, max_degree), 0, num_operators + 1, dtype=jnp.int32)

    facts_triplets = jnp.stack([
        jax.random.randint(k_rel, (num_facts,), 0, num_operators, dtype=jnp.int32),
        jax.random.randint(k_hf, (num_facts,), 0, num_entities, dtype=jnp.int32),
        jax.random.randint(k_tf, (num_facts,), 0, num_entities, dtype=jnp.int32),
    ], axis=1)                                                        # (num_facts, 3)

    queries = jax.random.randint(k_q, (batch,), 0, num_operators, dtype=jnp.int32)
    heads = jax.random.randint(k_h, (batch,), 0, num_entities, dtype=jnp.int32)

    model = RuleMinerPallas(
        k_model, rank, num_steps, num_entities, num_operators, entity_degrees,
        query_include_reverse=True,
        entity_embedding_dim=32, query_embedding_dim=32,
        entity_rnn_hidden_size=32, query_rnn_hidden_size=32)

    logits = model.forward(queries, heads, facts_triplets)
    jax.block_until_ready(logits)

    # tolerance check against a pure-JAX f32 reference (bf16 operands => small drift)
    logits_ref = model.forward_reference(queries, heads, facts_triplets)
    np.testing.assert_allclose(np.asarray(logits), np.asarray(logits_ref),
                               rtol=5e-2, atol=5e-2)

    assert logits.shape == (batch, num_entities)
    assert bool(jnp.all(jnp.isfinite(logits)))
    print("KERNEL_OK")
</pallas_src>

<mosaic_0001>
module attributes {stable_mosaic.version = 11 : i64} {
  func.func @kernel(%arg0: i32, %arg1: memref<16x128xf32, #tpu.memory_space<vmem>>, %arg2: memref<128x512xbf16, #tpu.memory_space<vmem>>, %arg3: memref<3x16x5xf32, #tpu.memory_space<vmem>>, %arg4: memref<16x128xf32, #tpu.memory_space<vmem>>) attributes {dimension_semantics = [#tpu.dimension_semantics<parallel>], iteration_bounds = array<i64: 1>, scalar_prefetch = 0 : i64, scratch_operands = 0 : i64, tpu.core_type = #tpu.core_type<tc>, window_params = [{transform_indices = @transform_0, window_bounds = array<i64: 16, 128>}, {pipeline_mode = #tpu.pipeline_mode<synchronous>, transform_indices = @transform_1, window_bounds = array<i64: 128, 512>}, {transform_indices = @transform_2, window_bounds = array<i64: 3, 16, 5>}, {transform_indices = @transform_3, window_bounds = array<i64: 16, 128>}]} {
    %c0 = arith.constant 0 : index
    %c0_0 = arith.constant 0 : index
    %0 = vector.load %arg1[%c0, %c0_0] : memref<16x128xf32, #tpu.memory_space<vmem>>, vector<16x128xf32>
    %c0_1 = arith.constant 0 : index
    %c0_2 = arith.constant 0 : index
    %1 = vector.load %arg4[%c0_1, %c0_2] : memref<16x128xf32, #tpu.memory_space<vmem>>, vector<16x128xf32>
    tpu.vector_store %arg4[%c0_1, %c0_2], %0 {strides = array<i32>} : memref<16x128xf32, #tpu.memory_space<vmem>>, vector<16x128xf32>,
    %c0_3 = arith.constant 0 : index
    %c0_4 = arith.constant 0 : index
    %2 = vector.load %arg4[%c0_3, %c0_4] : memref<16x128xf32, #tpu.memory_space<vmem>>, vector<16x128xf32>
    %c0_5 = arith.constant 0 : index
    %c0_6 = arith.constant 0 : index
    %c0_7 = arith.constant 0 : index
    %3 = vector.load %arg3[%c0_5, %c0_6, %c0_7] : memref<3x16x5xf32, #tpu.memory_space<vmem>>, vector<1x16x5xf32>
    %4 = vector.shape_cast %3 : vector<1x16x5xf32> to vector<16x5xf32>
    %5 = arith.truncf %2 : vector<16x128xf32> to vector<16x128xbf16>
    %c0_8 = arith.constant 0 : index
    %c0_9 = arith.constant 0 : index
    %6 = vector.load %arg2[%c0_8, %c0_9] : memref<128x512xbf16, #tpu.memory_space<vmem>>, vector<128x512xbf16>
    %cst = arith.constant dense<0.000000e+00> : vector<16x512xf32>
    %7 = tpu.matmul %5, %6, %cst {dimension_numbers = #tpu.dot_dimension_numbers<[1], [0], [0], [1], [0, 0, 1, 1], [], []>} : vector<16x128xbf16>, vector<128x512xbf16>, vector<16x512xf32> -> vector<16x512xf32>
    %8 = vector.extract_strided_slice %4 {offsets = [0, 4], sizes = [16, 1], strides = [1, 1]} : vector<16x5xf32> to vector<16x1xf32>
    %9 = vector.broadcast %8 : vector<16x1xf32> to vector<16x128xf32>
    %10 = arith.mulf %2, %9 : vector<16x128xf32>
    %11 = vector.extract_strided_slice %7 {offsets = [0, 0], sizes = [16, 128], strides = [1, 1]} : vector<16x512xf32> to vector<16x128xf32>
    %12 = vector.extract_strided_slice %4 {offsets = [0, 0], sizes = [16, 1], strides = [1, 1]} : vector<16x5xf32> to vector<16x1xf32>
    %13 = vector.broadcast %12 : vector<16x1xf32> to vector<16x128xf32>
    %14 = arith.mulf %11, %13 : vector<16x128xf32>
    %15 = arith.addf %10, %14 : vector<16x128xf32>
    %16 = vector.extract_strided_slice %7 {offsets = [0, 128], sizes = [16, 128], strides = [1, 1]} : vector<16x512xf32> to vector<16x128xf32>
    %17 = vector.extract_strided_slice %4 {offsets = [0, 1], sizes = [16, 1], strides = [1, 1]} : vector<16x5xf32> to vector<16x1xf32>
    %18 = vector.broadcast %17 : vector<16x1xf32> to vector<16x128xf32>
    %19 = arith.mulf %16, %18 : vector<16x128xf32>
    %20 = arith.addf %15, %19 : vector<16x128xf32>
    %21 = vector.extract_strided_slice %7 {offsets = [0, 256], sizes = [16, 128], strides = [1, 1]} : vector<16x512xf32> to vector<16x128xf32>
    %22 = vector.extract_strided_slice %4 {offsets = [0, 2], sizes = [16, 1], strides = [1, 1]} : vector<16x5xf32> to vector<16x1xf32>
    %23 = vector.broadcast %22 : vector<16x1xf32> to vector<16x128xf32>
    %24 = arith.mulf %21, %23 : vector<16x128xf32>
    %25 = arith.addf %20, %24 : vector<16x128xf32>
    %26 = vector.extract_strided_slice %7 {offsets = [0, 384], sizes = [16, 128], strides = [1, 1]} : vector<16x512xf32> to vector<16x128xf32>
    %27 = vector.extract_strided_slice %4 {offsets = [0, 3], sizes = [16, 1], strides = [1, 1]} : vector<16x5xf32> to vector<16x1xf32>
    %28 = vector.broadcast %27 : vector<16x1xf32> to vector<16x128xf32>
    %29 = arith.mulf %26, %28 : vector<16x128xf32>
    %30 = arith.addf %25, %29 : vector<16x128xf32>
    %cst_10 = arith.constant dense<0.000000e+00> : vector<16xf32>
    %31 = vector.multi_reduction <add>, %30, %cst_10 [1] : vector<16x128xf32> to vector<16xf32>
    %32 = vector.shape_cast %31 : vector<16xf32> to vector<16x1xf32>
    %cst_11 = arith.constant 9.99999968E-21 : f32
    %33 = vector.broadcast %cst_11 : f32 to vector<16x1xf32>
    %34 = arith.maximumf %33, %32 : vector<16x1xf32>
    %35 = vector.broadcast %34 : vector<16x1xf32> to vector<16x128xf32>
    %36 = arith.divf %30, %35 : vector<16x128xf32>
    %c0_12 = arith.constant 0 : index
    %c0_13 = arith.constant 0 : index
    %37 = vector.load %arg4[%c0_12, %c0_13] : memref<16x128xf32, #tpu.memory_space<vmem>>, vector<16x128xf32>
    tpu.vector_store %arg4[%c0_12, %c0_13], %36 {strides = array<i32>} : memref<16x128xf32, #tpu.memory_space<vmem>>, vector<16x128xf32>,
    %c0_14 = arith.constant 0 : index
    %c0_15 = arith.constant 0 : index
    %38 = vector.load %arg4[%c0_14, %c0_15] : memref<16x128xf32, #tpu.memory_space<vmem>>, vector<16x128xf32>
    %c1 = arith.constant 1 : index
    %c0_16 = arith.constant 0 : index
    %c0_17 = arith.constant 0 : index
    %39 = vector.load %arg3[%c1, %c0_16, %c0_17] : memref<3x16x5xf32, #tpu.memory_space<vmem>>, vector<1x16x5xf32>
    %40 = vector.shape_cast %39 : vector<1x16x5xf32> to vector<16x5xf32>
    %41 = arith.truncf %38 : vector<16x128xf32> to vector<16x128xbf16>
    %c0_18 = arith.constant 0 : index
    %c0_19 = arith.constant 0 : index
    %42 = vector.load %arg2[%c0_18, %c0_19] : memref<128x512xbf16, #tpu.memory_space<vmem>>, vector<128x512xbf16>
    %cst_20 = arith.constant dense<0.000000e+00> : vector<16x512xf32>
    %43 = tpu.matmul %41, %42, %cst_20 {dimension_numbers = #tpu.dot_dimension_numbers<[1], [0], [0], [1], [0, 0, 1, 1], [], []>} : vector<16x128xbf16>, vector<128x512xbf16>, vector<16x512xf32> -> vector<16x512xf32>
    %44 = vector.extract_strided_slice %40 {offsets = [0, 4], sizes = [16, 1], strides = [1, 1]} : vector<16x5xf32> to vector<16x1xf32>
    %45 = vector.broadcast %44 : vector<16x1xf32> to vector<16x128xf32>
    %46 = arith.mulf %38, %45 : vector<16x128xf32>
    %47 = vector.extract_strided_slice %43 {offsets = [0, 0], sizes = [16, 128], strides = [1, 1]} : vector<16x512xf32> to vector<16x128xf32>
    %48 = vector.extract_strided_slice %40 {offsets = [0, 0], sizes = [16, 1], strides = [1, 1]} : vector<16x5xf32> to vector<16x1xf32>
    %49 = vector.broadcast %48 : vector<16x1xf32> to vector<16x128xf32>
    %50 = arith.mulf %47, %49 : vector<16x128xf32>
    %51 = arith.addf %46, %50 : vector<16x128xf32>
    %52 = vector.extract_strided_slice %43 {offsets = [0, 128], sizes = [16, 128], strides = [1, 1]} : vector<16x512xf32> to vector<16x128xf32>
    %53 = vector.extract_strided_slice %40 {offsets = [0, 1], sizes = [16, 1], strides = [1, 1]} : vector<16x5xf32> to vector<16x1xf32>
    %54 = vector.broadcast %53 : vector<16x1xf32> to vector<16x128xf32>
    %55 = arith.mulf %52, %54 : vector<16x128xf32>
    %56 = arith.addf %51, %55 : vector<16x128xf32>
    %57 = vector.extract_strided_slice %43 {offsets = [0, 256], sizes = [16, 128], strides = [1, 1]} : vector<16x512xf32> to vector<16x128xf32>
    %58 = vector.extract_strided_slice %40 {offsets = [0, 2], sizes = [16, 1], strides = [1, 1]} : vector<16x5xf32> to vector<16x1xf32>
    %59 = vector.broadcast %58 : vector<16x1xf32> to vector<16x128xf32>
    %60 = arith.mulf %57, %59 : vector<16x128xf32>
    %61 = arith.addf %56, %60 : vector<16x128xf32>
    %62 = vector.extract_strided_slice %43 {offsets = [0, 384], sizes = [16, 128], strides = [1, 1]} : vector<16x512xf32> to vector<16x128xf32>
    %63 = vector.extract_strided_slice %40 {offsets = [0, 3], sizes = [16, 1], strides = [1, 1]} : vector<16x5xf32> to vector<16x1xf32>
    %64 = vector.broadcast %63 : vector<16x1xf32> to vector<16x128xf32>
    %65 = arith.mulf %62, %64 : vector<16x128xf32>
    %66 = arith.addf %61, %65 : vector<16x128xf32>
    %cst_21 = arith.constant dense<0.000000e+00> : vector<16xf32>
    %67 = vector.multi_reduction <add>, %66, %cst_21 [1] : vector<16x128xf32> to vector<16xf32>
    %68 = vector.shape_cast %67 : vector<16xf32> to vector<16x1xf32>
    %cst_22 = arith.constant 9.99999968E-21 : f32
    %69 = vector.broadcast %cst_22 : f32 to vector<16x1xf32>
    %70 = arith.maximumf %69, %68 : vector<16x1xf32>
    %71 = vector.broadcast %70 : vector<16x1xf32> to vector<16x128xf32>
    %72 = arith.divf %66, %71 : vector<16x128xf32>
    %c0_23 = arith.constant 0 : index
    %c0_24 = arith.constant 0 : index
    %73 = vector.load %arg4[%c0_23, %c0_24] : memref<16x128xf32, #tpu.memory_space<vmem>>, vector<16x128xf32>
    tpu.vector_store %arg4[%c0_23, %c0_24], %72 {strides = array<i32>} : memref<16x128xf32, #tpu.memory_space<vmem>>, vector<16x128xf32>,
    %c0_25 = arith.constant 0 : index
    %c0_26 = arith.constant 0 : index
    %74 = vector.load %arg4[%c0_25, %c0_26] : memref<16x128xf32, #tpu.memory_space<vmem>>, vector<16x128xf32>
    %c2 = arith.constant 2 : index
    %c0_27 = arith.constant 0 : index
    %c0_28 = arith.constant 0 : index
    %75 = vector.load %arg3[%c2, %c0_27, %c0_28] : memref<3x16x5xf32, #tpu.memory_space<vmem>>, vector<1x16x5xf32>
    %76 = vector.shape_cast %75 : vector<1x16x5xf32> to vector<16x5xf32>
    %77 = arith.truncf %74 : vector<16x128xf32> to vector<16x128xbf16>
    %c0_29 = arith.constant 0 : index
    %c0_30 = arith.constant 0 : index
    %78 = vector.load %arg2[%c0_29, %c0_30] : memref<128x512xbf16, #tpu.memory_space<vmem>>, vector<128x512xbf16>
    %cst_31 = arith.constant dense<0.000000e+00> : vector<16x512xf32>
    %79 = tpu.matmul %77, %78, %cst_31 {dimension_numbers = #tpu.dot_dimension_numbers<[1], [0], [0], [1], [0, 0, 1, 1], [], []>} : vector<16x128xbf16>, vector<128x512xbf16>, vector<16x512xf32> -> vector<16x512xf32>
    %80 = vector.extract_strided_slice %76 {offsets = [0, 4], sizes = [16, 1], strides = [1, 1]} : vector<16x5xf32> to vector<16x1xf32>
    %81 = vector.broadcast %80 : vector<16x1xf32> to vector<16x128xf32>
    %82 = arith.mulf %74, %81 : vector<16x128xf32>
    %83 = vector.extract_strided_slice %79 {offsets = [0, 0], sizes = [16, 128], strides = [1, 1]} : vector<16x512xf32> to vector<16x128xf32>
    %84 = vector.extract_strided_slice %76 {offsets = [0, 0], sizes = [16, 1], strides = [1, 1]} : vector<16x5xf32> to vector<16x1xf32>
    %85 = vector.broadcast %84 : vector<16x1xf32> to vector<16x128xf32>
    %86 = arith.mulf %83, %85 : vector<16x128xf32>
    %87 = arith.addf %82, %86 : vector<16x128xf32>
    %88 = vector.extract_strided_slice %79 {offsets = [0, 128], sizes = [16, 128], strides = [1, 1]} : vector<16x512xf32> to vector<16x128xf32>
    %89 = vector.extract_strided_slice %76 {offsets = [0, 1], sizes = [16, 1], strides = [1, 1]} : vector<16x5xf32> to vector<16x1xf32>
    %90 = vector.broadcast %89 : vector<16x1xf32> to vector<16x128xf32>
    %91 = arith.mulf %88, %90 : vector<16x128xf32>
    %92 = arith.addf %87, %91 : vector<16x128xf32>
    %93 = vector.extract_strided_slice %79 {offsets = [0, 256], sizes = [16, 128], strides = [1, 1]} : vector<16x512xf32> to vector<16x128xf32>
    %94 = vector.extract_strided_slice %76 {offsets = [0, 2], sizes = [16, 1], strides = [1, 1]} : vector<16x5xf32> to vector<16x1xf32>
    %95 = vector.broadcast %94 : vector<16x1xf32> to vector<16x128xf32>
    %96 = arith.mulf %93, %95 : vector<16x128xf32>
    %97 = arith.addf %92, %96 : vector<16x128xf32>
    %98 = vector.extract_strided_slice %79 {offsets = [0, 384], sizes = [16, 128], strides = [1, 1]} : vector<16x512xf32> to vector<16x128xf32>
    %99 = vector.extract_strided_slice %76 {offsets = [0, 3], sizes = [16, 1], strides = [1, 1]} : vector<16x5xf32> to vector<16x1xf32>
    %100 = vector.broadcast %99 : vector<16x1xf32> to vector<16x128xf32>
    %101 = arith.mulf %98, %100 : vector<16x128xf32>
    %102 = arith.addf %97, %101 : vector<16x128xf32>
    %cst_32 = arith.constant dense<0.000000e+00> : vector<16xf32>
    %103 = vector.multi_reduction <add>, %102, %cst_32 [1] : vector<16x128xf32> to vector<16xf32>
    %104 = vector.shape_cast %103 : vector<16xf32> to vector<16x1xf32>
    %cst_33 = arith.constant 9.99999968E-21 : f32
    %105 = vector.broadcast %cst_33 : f32 to vector<16x1xf32>
    %106 = arith.maximumf %105, %104 : vector<16x1xf32>
    %107 = vector.broadcast %106 : vector<16x1xf32> to vector<16x128xf32>
    %108 = arith.divf %102, %107 : vector<16x128xf32>
    %c0_34 = arith.constant 0 : index
    %c0_35 = arith.constant 0 : index
    %109 = vector.load %arg4[%c0_34, %c0_35] : memref<16x128xf32, #tpu.memory_space<vmem>>, vector<16x128xf32>
    tpu.vector_store %arg4[%c0_34, %c0_35], %108 {strides = array<i32>} : memref<16x128xf32, #tpu.memory_space<vmem>>, vector<16x128xf32>,
    return
  }
  func.func @transform_0(%arg0: i32) -> (i32, i32) {
    %c0_i32 = arith.constant 0 : i32
    %c0_i32_0 = arith.constant 0 : i32
    return %arg0, %c0_i32 : i32, i32
  }
  func.func @transform_1(%arg0: i32) -> (i32, i32) {
    %c0_i32 = arith.constant 0 : i32
    %c0_i32_0 = arith.constant 0 : i32
    %c0_i32_1 = arith.constant 0 : i32
    return %c0_i32, %c0_i32_0 : i32, i32
  }
  func.func @transform_2(%arg0: i32) -> (i32, i32, i32) {
    %c0_i32 = arith.constant 0 : i32
    %c0_i32_0 = arith.constant 0 : i32
    %c0_i32_1 = arith.constant 0 : i32
    return %c0_i32, %arg0, %c0_i32_0 : i32, i32, i32
  }
  func.func @transform_3(%arg0: i32) -> (i32, i32) {
    %c0_i32 = arith.constant 0 : i32
    %c0_i32_0 = arith.constant 0 : i32
    return %arg0, %c0_i32 : i32, i32
  }
}

</mosaic_0001>

<llo_original>
// kernel: tpu_custom_call.1
$region0: #{tpu_custom_call.1}
  #allocation0 [shape = 'u32[]', space=smem, size = 0x4, offset = 0x4, fixed_abs, tag = 'smem constant byte address 0x4 - core index']
  #allocation1 [shape = 'u32[144,128]{1,0:T(1,128)}', space=vmem, size = 0x12000, scoped, tag = 'internal scratch']
  %s0 = inlined_call_operand.vmem [shape: f32[16,128], index: 0, kind: input, shape index: {}]
  %s1 = inlined_call_operand.hbm [shape: bf16[128,512], index: 1, kind: input, shape index: {}]
  %s2 = inlined_call_operand.vmem [shape: f32[3,16,5], index: 2, kind: input, shape index: {}]
  %s3 = inlined_call_operand.hbm [shape: f32[16,128], index: 3, kind: output, shape index: {}]
  %s4 = sld [smem:[#allocation0]]
  $region26: #{tpu_custom_call.1} parent=0
    _
  %s6 = ssub.s32 1, %s4
  %s7 = scalar_select 0, %s6, %s4
  $region1: #{tpu_custom_call.1} parent=0
    #allocation2 [shape = 'u8[131072]{0}', space=vmem, size = 0x20000, scoped, tag = 'input window, operand 1, single buffered']
    #allocation3 [shape = 's32[1]{0}', space=sflag, size = 0x4, scoped, tag = 'scoped memory for tpu_custom_call.1']
    #allocation4 [shape = 's32[1]{0}', space=sflag, size = 0x4, scoped, tag = 'scoped memory for tpu_custom_call.1']
    #allocation5 [shape = 'u8[8192]{0}', space=vmem, size = 0x2000, scoped, tag = 'output window, operand 0, single buffered']
    %8 = vsyncpa [#allocation3], 0
    %9 = vsyncpa [#allocation4], 0
    // Predicated region
    $region2: #{tpu_custom_call.1} parent=1 // pred_check
      _
    $region3: #{tpu_custom_call.1} parent=1 // pred_check_branch
      %11 = sbr.rel (0) target = $region5
    $region4: #{tpu_custom_call.1} parent=1 // pred_region
      _
    $region5: #{tpu_custom_call.1} parent=1 // pred_fallthru
      _
    // Predicated region
    $region6: #{tpu_custom_call.1} parent=1 // pred_check
      _
    $region7: #{tpu_custom_call.1} parent=1 // pred_check_branch
      %13 = sbr.rel (0) target = $region9
    $region8: #{tpu_custom_call.1} parent=1 // pred_region
      %s15 = ssub.s32 4096, 4096
      %16 = vsyncadd [#allocation3], %s15
      %s17 = sshll.u32 [#allocation2], 4
      %s18 = int_to_ptr.vmem [resolvable:$true] %s17
      %23 = dma.hbm_to_vmem [thread:$0]  %s1, 4096, %s18, [#allocation3], 256, 256, 16
    $region9: #{tpu_custom_call.1} parent=1 // pred_fallthru
      _
    // Predicated region
    $region10: #{tpu_custom_call.1} parent=1 // pred_check
      _
    $region11: #{tpu_custom_call.1} parent=1 // pred_check_branch
      %25 = sbr.rel (0) target = $region13
    $region12: #{tpu_custom_call.1} parent=1 // pred_region
      _
    $region13: #{tpu_custom_call.1} parent=1 // pred_fallthru
      _
    // Predicated region
    $region14: #{tpu_custom_call.1} parent=1 // pred_check
      _
    $region15: #{tpu_custom_call.1} parent=1 // pred_check_branch
      %27 = sbr.rel (0) target = $region17
    $region16: #{tpu_custom_call.1} parent=1 // pred_region
      %28 = dma.done [#allocation3], 4096
    $region17: #{tpu_custom_call.1} parent=1 // pred_fallthru
      _
    %v30 = vld [vmem:[%s0] sm:$0xff]
    %v31 = vld [vmem:[%s0 + $0x8] sm:$0xff]
    %32 = vst [vmem:[#allocation5] sm:$0xff] %v30
    %33 = vst [vmem:[#allocation5 + $0x8] sm:$0xff] %v31
    %v34 = vld [vmem:[#allocation5] sm:$0xff]
    %v35 = vld [vmem:[#allocation5 + $0x8] sm:$0xff]
    %v36 = vld [vmem:[%s2] sm:$0xff]
    %v37 = vld [vmem:[%s2 + $0x8] sm:$0xff]
    %v38 = vpack.c.bf16 %v35, %v34
    %v39 = vld [vmem:[#allocation2] sm:$0xff]
    %v40 = vld [vmem:[#allocation2 + $0x8] sm:$0xff]
    %v41 = vld [vmem:[#allocation2 + $0x10] sm:$0xff]
    %v42 = vld [vmem:[#allocation2 + $0x18] sm:$0xff]
    %v43 = vld [vmem:[#allocation2 + $0x20] sm:$0xff]
    %v44 = vld [vmem:[#allocation2 + $0x28] sm:$0xff]
    %v45 = vld [vmem:[#allocation2 + $0x30] sm:$0xff]
    %v46 = vld [vmem:[#allocation2 + $0x38] sm:$0xff]
    %v47 = vld [vmem:[#allocation2 + $0x40] sm:$0xff]
    %v48 = vld [vmem:[#allocation2 + $0x48] sm:$0xff]
    %v49 = vld [vmem:[#allocation2 + $0x50] sm:$0xff]
    %v50 = vld [vmem:[#allocation2 + $0x58] sm:$0xff]
    %v51 = vld [vmem:[#allocation2 + $0x60] sm:$0xff]
    %v52 = vld [vmem:[#allocation2 + $0x68] sm:$0xff]
    %v53 = vld [vmem:[#allocation2 + $0x70] sm:$0xff]
    %v54 = vld [vmem:[#allocation2 + $0x78] sm:$0xff]
    %v55 = vld [vmem:[#allocation2 + $0x80] sm:$0xff]
    %v56 = vld [vmem:[#allocation2 + $0x88] sm:$0xff]
    %v57 = vld [vmem:[#allocation2 + $0x90] sm:$0xff]
    %v58 = vld [vmem:[#allocation2 + $0x98] sm:$0xff]
    %v59 = vld [vmem:[#allocation2 + $0xa0] sm:$0xff]
    %v60 = vld [vmem:[#allocation2 + $0xa8] sm:$0xff]
    %v61 = vld [vmem:[#allocation2 + $0xb0] sm:$0xff]
    %v62 = vld [vmem:[#allocation2 + $0xb8] sm:$0xff]
    %v63 = vld [vmem:[#allocation2 + $0xc0] sm:$0xff]
    %v64 = vld [vmem:[#allocation2 + $0xc8] sm:$0xff]
    %v65 = vld [vmem:[#allocation2 + $0xd0] sm:$0xff]
    %v66 = vld [vmem:[#allocation2 + $0xd8] sm:$0xff]
    %v67 = vld [vmem:[#allocation2 + $0xe0] sm:$0xff]
    %v68 = vld [vmem:[#allocation2 + $0xe8] sm:$0xff]
    %v69 = vld [vmem:[#allocation2 + $0xf0] sm:$0xff]
    %v70 = vld [vmem:[#allocation2 + $0xf8] sm:$0xff]
    %v103 = vunpack.c.l.b16 %v39
    %v104 = vunpack.c.h.b16 %v39
    %v105 = vunpack.c.l.b16 %v40
    %v106 = vunpack.c.h.b16 %v40
    %v107 = vunpack.c.l.b16 %v41
    %v108 = vunpack.c.h.b16 %v41
    %v109 = vunpack.c.l.b16 %v42
    %v110 = vunpack.c.h.b16 %v42
    %v111 = vunpack.c.l.b16 %v43
    %v112 = vunpack.c.h.b16 %v43
    %v113 = vunpack.c.l.b16 %v44
    %v114 = vunpack.c.h.b16 %v44
    %v115 = vunpack.c.l.b16 %v45
    %v116 = vunpack.c.h.b16 %v45
    %v117 = vunpack.c.l.b16 %v46
    %v118 = vunpack.c.h.b16 %v46
    %v119 = vunpack.c.l.b16 %v47
    %v120 = vunpack.c.h.b16 %v47
    %v121 = vunpack.c.l.b16 %v48
    %v122 = vunpack.c.h.b16 %v48
    %v123 = vunpack.c.l.b16 %v49
    %v124 = vunpack.c.h.b16 %v49
    %v125 = vunpack.c.l.b16 %v50
    %v126 = vunpack.c.h.b16 %v50
    %v127 = vunpack.c.l.b16 %v51
    %v128 = vunpack.c.h.b16 %v51
    %v129 = vunpack.c.l.b16 %v52
    %v130 = vunpack.c.h.b16 %v52
    %v131 = vunpack.c.l.b16 %v53
    %v132 = vunpack.c.h.b16 %v53
    %v133 = vunpack.c.l.b16 %v54
    %v134 = vunpack.c.h.b16 %v54
    %v135 = vunpack.c.l.b16 %v55
    %v136 = vunpack.c.h.b16 %v55
    %v137 = vunpack.c.l.b16 %v56
    %v138 = vunpack.c.h.b16 %v56
    %v139 = vunpack.c.l.b16 %v57
    %v140 = vunpack.c.h.b16 %v57
    %v141 = vunpack.c.l.b16 %v58
    %v142 = vunpack.c.h.b16 %v58
    %v143 = vunpack.c.l.b16 %v59
    %v144 = vunpack.c.h.b16 %v59
    %v145 = vunpack.c.l.b16 %v60
    %v146 = vunpack.c.h.b16 %v60
    %v147 = vunpack.c.l.b16 %v61
    %v148 = vunpack.c.h.b16 %v61
    %v149 = vunpack.c.l.b16 %v62
    %v150 = vunpack.c.h.b16 %v62
    %v151 = vunpack.c.l.b16 %v63
    %v152 = vunpack.c.h.b16 %v63
    %v153 = vunpack.c.l.b16 %v64
    %v154 = vunpack.c.h.b16 %v64
    %v155 = vunpack.c.l.b16 %v65
    %v156 = vunpack.c.h.b16 %v65
    %v157 = vunpack.c.l.b16 %v66
    %v158 = vunpack.c.h.b16 %v66
    %v159 = vunpack.c.l.b16 %v67
    %v160 = vunpack.c.h.b16 %v67
    %v161 = vunpack.c.l.b16 %v68
    %v162 = vunpack.c.h.b16 %v68
    %v163 = vunpack.c.l.b16 %v69
    %v164 = vunpack.c.h.b16 %v69
    %v165 = vunpack.c.l.b16 %v70
    %v166 = vunpack.c.h.b16 %v70
    %v167 = vpack.c.b16 %v107, %v103
    %v168 = vpack.c.b16 %v108, %v104
    %v169 = vpack.c.b16 %v109, %v105
    %v170 = vpack.c.b16 %v110, %v106
    %v171 = vpack.c.b16 %v115, %v111
    %v172 = vpack.c.b16 %v116, %v112
    %v173 = vpack.c.b16 %v117, %v113
    %v174 = vpack.c.b16 %v118, %v114
    %v175 = vpack.c.b16 %v123, %v119
    %v176 = vpack.c.b16 %v124, %v120
    %v177 = vpack.c.b16 %v125, %v121
    %v178 = vpack.c.b16 %v126, %v122
    %v179 = vpack.c.b16 %v131, %v127
    %v180 = vpack.c.b16 %v132, %v128
    %v181 = vpack.c.b16 %v133, %v129
    %v182 = vpack.c.b16 %v134, %v130
    %v183 = vpack.c.b16 %v139, %v135
    %v184 = vpack.c.b16 %v140, %v136
    %v185 = vpack.c.b16 %v141, %v137
    %v186 = vpack.c.b16 %v142, %v138
    %v187 = vpack.c.b16 %v147, %v143
    %v188 = vpack.c.b16 %v148, %v144
    %v189 = vpack.c.b16 %v149, %v145
    %v190 = vpack.c.b16 %v150, %v146
    %v191 = vpack.c.b16 %v155, %v151
    %v192 = vpack.c.b16 %v156, %v152
    %v193 = vpack.c.b16 %v157, %v153
    %v194 = vpack.c.b16 %v158, %v154
    %v195 = vpack.c.b16 %v163, %v159
    %v196 = vpack.c.b16 %v164, %v160
    %v197 = vpack.c.b16 %v165, %v161
    %v198 = vpack.c.b16 %v166, %v162
    %231 = vmatprep.subr.bf16.mxu0 %v196
    %232 = vmatpush1.bf16.msra.mxu0 %v195
    %233 = vmatprep.subr.bf16.mxu0 %v192
    %234 = vmatpush1.bf16.msra.mxu0 %v191
    %235 = vmatprep.subr.bf16.mxu0 %v188
    %236 = vmatpush1.bf16.msra.mxu0 %v187
    %237 = vmatprep.subr.bf16.mxu0 %v184
    %238 = vmatpush1.bf16.msra.mxu0 %v183
    %239 = vmatprep.subr.bf16.mxu0 %v180
    %240 = vmatpush1.bf16.msra.mxu0 %v179
    %241 = vmatprep.subr.bf16.mxu0 %v176
    %242 = vmatpush1.bf16.msra.mxu0 %v175
    %243 = vmatprep.subr.bf16.mxu0 %v172
    %244 = vmatpush1.bf16.msra.mxu0 %v171
    %245 = vmatprep.subr.bf16.mxu0 %v168
    %246 = vmatpush1.bf16.msra.mxu0 %v167
    %247 = vmatprep.subr.bf16.mxu0 0
    %248 = vmatpush2.bf16.msra.mxu0 0
    %249 = vmatprep.subr.bf16.mxu0 0
    %250 = vmatpush2.bf16.msra.mxu0 0
    %251 = vmatprep.subr.bf16.mxu0 0
    %252 = vmatpush2.bf16.msra.mxu0 0
    %253 = vmatprep.subr.bf16.mxu0 0
    %254 = vmatpush2.bf16.msra.mxu0 0
    %255 = vmatprep.subr.bf16.mxu0 0
    %256 = vmatpush2.bf16.msra.mxu0 0
    %257 = vmatprep.subr.bf16.mxu0 0
    %258 = vmatpush2.bf16.msra.mxu0 0
    %259 = vmatprep.subr.bf16.mxu0 0
    %260 = vmatpush2.bf16.msra.mxu0 0
    %261 = vmatprep.subr.bf16.mxu0 0
    %262 = vmatpush2.bf16.msra.mxu0 0
    %263 = vmatprep.mubr.bf16.mxu0 0
    %264 = vmatmul.mubr.bf16.gmra.mxu0 %v38
    %v265 = vpop.f32.mrf.mxu0
    %v266 = vadd.f32 0.0, %v265
    %v267 = vpop.f32.mrf.mxu0
    %v268 = vadd.f32 0.0, %v267
    %v269 = vpop.f32.mrf.mxu0
    %v270 = vadd.f32 0.0, %v269
    %v271 = vpop.f32.mrf.mxu0
    %v272 = vadd.f32 0.0, %v271
    %273 = vdwg.mxu0
    %274 = vmatprep.subr.bf16.mxu0 %v198
    %275 = vmatpush1.bf16.msra.mxu0 %v197
    %276 = vmatprep.subr.bf16.mxu0 %v194
    %277 = vmatpush1.bf16.msra.mxu0 %v193
    %278 = vmatprep.subr.bf16.mxu0 %v190
    %279 = vmatpush1.bf16.msra.mxu0 %v189
    %280 = vmatprep.subr.bf16.mxu0 %v186
    %281 = vmatpush1.bf16.msra.mxu0 %v185
    %282 = vmatprep.subr.bf16.mxu0 %v182
    %283 = vmatpush1.bf16.msra.mxu0 %v181
    %284 = vmatprep.subr.bf16.mxu0 %v178
    %285 = vmatpush1.bf16.msra.mxu0 %v177
    %286 = vmatprep.subr.bf16.mxu0 %v174
    %287 = vmatpush1.bf16.msra.mxu0 %v173
    %288 = vmatprep.subr.bf16.mxu0 %v170
    %289 = vmatpush1.bf16.msra.mxu0 %v169
    %290 = vmatprep.subr.bf16.mxu0 0
    %291 = vmatpush2.bf16.msra.mxu0 0
    %292 = vmatprep.subr.bf16.mxu0 0
    %293 = vmatpush2.bf16.msra.mxu0 0
    %294 = vmatprep.subr.bf16.mxu0 0
    %295 = vmatpush2.bf16.msra.mxu0 0
    %296 = vmatprep.subr.bf16.mxu0 0
    %297 = vmatpush2.bf16.msra.mxu0 0
    %298 = vmatprep.subr.bf16.mxu0 0
    %299 = vmatpush2.bf16.msra.mxu0 0
    %300 = vmatprep.subr.bf16.mxu0 0
    %301 = vmatpush2.bf16.msra.mxu0 0
    %302 = vmatprep.subr.bf16.mxu0 0
    %303 = vmatpush2.bf16.msra.mxu0 0
    %304 = vmatprep.subr.bf16.mxu0 0
    %305 = vmatpush2.bf16.msra.mxu0 0
    %306 = vmatprep.mubr.bf16.mxu0 0
    %307 = vmatmul.mubr.bf16.gmra.mxu0 %v38
    %v308 = vpop.f32.mrf.mxu0
    %v309 = vadd.f32 0.0, %v308
    %v310 = vpop.f32.mrf.mxu0
    %v311 = vadd.f32 0.0, %v310
    %v312 = vpop.f32.mrf.mxu0
    %v313 = vadd.f32 0.0, %v312
    %v314 = vpop.f32.mrf.mxu0
    %v315 = vadd.f32 0.0, %v314
    %316 = vdwg.mxu0
    %318 = vset.pattern.permute.xlu0 4
    %319 = vperm.xlu0 %318, %v36
    %v320 = vpop.permute.xlu0 %319
    %323 = vset.pattern.permute.xlu0 4
    %324 = vperm.xlu0 %323, %v37
    %v325 = vpop.permute.xlu0 %324
    %v327 = vmul.f32 %v34, %v320
    %v328 = vmul.f32 %v35, %v325
    %329 = vset.pattern.permute.xlu0 0
    %330 = vperm.xlu0 %329, %v36
    %v331 = vpop.permute.xlu0 %330
    %333 = vset.pattern.permute.xlu0 0
    %334 = vperm.xlu0 %333, %v37
    %v335 = vpop.permute.xlu0 %334
    %v337 = vmul.f32 %v266, %v331
    %v338 = vmul.f32 %v270, %v335
    %v339 = vadd.f32 %v327, %v337
    %v340 = vadd.f32 %v328, %v338
    %341 = vset.pattern.permute.xlu0 1
    %342 = vperm.xlu0 %341, %v36
    %v343 = vpop.permute.xlu0 %342
    %345 = vset.pattern.permute.xlu0 1
    %346 = vperm.xlu0 %345, %v37
    %v347 = vpop.permute.xlu0 %346
    %v349 = vmul.f32 %v268, %v343
    %v350 = vmul.f32 %v272, %v347
    %v351 = vadd.f32 %v339, %v349
    %v352 = vadd.f32 %v340, %v350
    %353 = vset.pattern.permute.xlu0 2
    %354 = vperm.xlu0 %353, %v36
    %v355 = vpop.permute.xlu0 %354
    %357 = vset.pattern.permute.xlu0 2
    %358 = vperm.xlu0 %357, %v37
    %v359 = vpop.permute.xlu0 %358
    %v361 = vmul.f32 %v309, %v355
    %v362 = vmul.f32 %v313, %v359
    %v363 = vadd.f32 %v351, %v361
    %v364 = vadd.f32 %v352, %v362
    %365 = vset.pattern.permute.xlu0 3
    %366 = vperm.xlu0 %365, %v36
    %v367 = vpop.permute.xlu0 %366
    %369 = vset.pattern.permute.xlu0 3
    %370 = vperm.xlu0 %369, %v37
    %v371 = vpop.permute.xlu0 %370
    %v373 = vmul.f32 %v311, %v367
    %v374 = vmul.f32 %v315, %v371
    %v375 = vadd.f32 %v363, %v373
    %v376 = vadd.f32 %v364, %v374
    %377 = vadd.xlane.f32.xlu0 %v375
    %v378 = vpop.xlane.xlu0 %377
    %379 = vadd.xlane.f32.xlu0 %v376
    %v380 = vpop.xlane.xlu0 %379
    %v381 = vmax.f32 %v378, 1e-20
    %v382 = vmax.f32 %v380, 1e-20
    %v383 = vrcp.pop %v381
    %v384 = vmul.f32 %v375, %v383
    %v385 = vrcp.pop %v382
    %v386 = vmul.f32 %v376, %v385
    %387 = vst [vmem:[#allocation5] sm:$0xff] %v384
    %388 = vst [vmem:[#allocation5 + $0x8] sm:$0xff] %v386
    %v389 = vld [vmem:[#allocation5] sm:$0xff]
    %v390 = vld [vmem:[#allocation5 + $0x8] sm:$0xff]
    %s391 = scalar_lea.vmem %s2, 16
    %v392 = vld [vmem:[%s391] sm:$0xff]
    %v393 = vld [vmem:[%s391 + $0x8] sm:$0xff]
    %v394 = vpack.c.bf16 %v390, %v389
    %v395 = vld [vmem:[#allocation2] sm:$0xff]
    %v396 = vld [vmem:[#allocation2 + $0x8] sm:$0xff]
    %v397 = vld [vmem:[#allocation2 + $0x10] sm:$0xff]
    %v398 = vld [vmem:[#allocation2 + $0x18] sm:$0xff]
    %v399 = vld [vmem:[#allocation2 + $0x20] sm:$0xff]
    %v400 = vld [vmem:[#allocation2 + $0x28] sm:$0xff]
    %v401 = vld [vmem:[#allocation2 + $0x30] sm:$0xff]
    %v402 = vld [vmem:[#allocation2 + $0x38] sm:$0xff]
    %v403 = vld [vmem:[#allocation2 + $0x40] sm:$0xff]
    %v404 = vld [vmem:[#allocation2 + $0x48] sm:$0xff]
    %v405 = vld [vmem:[#allocation2 + $0x50] sm:$0xff]
    %v406 = vld [vmem:[#allocation2 + $0x58] sm:$0xff]
    %v407 = vld [vmem:[#allocation2 + $0x60] sm:$0xff]
    %v408 = vld [vmem:[#allocation2 + $0x68] sm:$0xff]
    %v409 = vld [vmem:[#allocation2 + $0x70] sm:$0xff]
    %v410 = vld [vmem:[#allocation2 + $0x78] sm:$0xff]
    %v411 = vld [vmem:[#allocation2 + $0x80] sm:$0xff]
    %v412 = vld [vmem:[#allocation2 + $0x88] sm:$0xff]
    %v413 = vld [vmem:[#allocation2 + $0x90] sm:$0xff]
    %v414 = vld [vmem:[#allocation2 + $0x98] sm:$0xff]
    %v415 = vld [vmem:[#allocation2 + $0xa0] sm:$0xff]
    %v416 = vld [vmem:[#allocation2 + $0xa8] sm:$0xff]
    %v417 = vld [vmem:[#allocation2 + $0xb0] sm:$0xff]
    %v418 = vld [vmem:[#allocation2 + $0xb8] sm:$0xff]
    %v419 = vld [vmem:[#allocation2 + $0xc0] sm:$0xff]
    %v420 = vld [vmem:[#allocation2 + $0xc8] sm:$0xff]
    %v421 = vld [vmem:[#allocation2 + $0xd0] sm:$0xff]
    %v422 = vld [vmem:[#allocation2 + $0xd8] sm:$0xff]
    %v423 = vld [vmem:[#allocation2 + $0xe0] sm:$0xff]
    %v424 = vld [vmem:[#allocation2 + $0xe8] sm:$0xff]
    %v425 = vld [vmem:[#allocation2 + $0xf0] sm:$0xff]
    %v426 = vld [vmem:[#allocation2 + $0xf8] sm:$0xff]
    %v459 = vunpack.c.l.b16 %v395
    %v460 = vunpack.c.h.b16 %v395
    %v461 = vunpack.c.l.b16 %v396
    %v462 = vunpack.c.h.b16 %v396
    %v463 = vunpack.c.l.b16 %v397
    %v464 = vunpack.c.h.b16 %v397
    %v465 = vunpack.c.l.b16 %v398
    %v466 = vunpack.c.h.b16 %v398
    %v467 = vunpack.c.l.b16 %v399
    %v468 = vunpack.c.h.b16 %v399
    %v469 = vunpack.c.l.b16 %v400
    %v470 = vunpack.c.h.b16 %v400
    %v471 = vunpack.c.l.b16 %v401
    %v472 = vunpack.c.h.b16 %v401
    %v473 = vunpack.c.l.b16 %v402
    %v474 = vunpack.c.h.b16 %v402
    %v475 = vunpack.c.l.b16 %v403
    %v476 = vunpack.c.h.b16 %v403
    %v477 = vunpack.c.l.b16 %v404
    %v478 = vunpack.c.h.b16 %v404
    %v479 = vunpack.c.l.b16 %v405
    %v480 = vunpack.c.h.b16 %v405
    %v481 = vunpack.c.l.b16 %v406
    %v482 = vunpack.c.h.b16 %v406
    %v483 = vunpack.c.l.b16 %v407
    %v484 = vunpack.c.h.b16 %v407
    %v485 = vunpack.c.l.b16 %v408
    %v486 = vunpack.c.h.b16 %v408
    %v487 = vunpack.c.l.b16 %v409
    %v488 = vunpack.c.h.b16 %v409
    %v489 = vunpack.c.l.b16 %v410
    %v490 = vunpack.c.h.b16 %v410
    %v491 = vunpack.c.l.b16 %v411
    %v492 = vunpack.c.h.b16 %v411
    %v493 = vunpack.c.l.b16 %v412
    %v494 = vunpack.c.h.b16 %v412
    %v495 = vunpack.c.l.b16 %v413
    %v496 = vunpack.c.h.b16 %v413
    %v497 = vunpack.c.l.b16 %v414
    %v498 = vunpack.c.h.b16 %v414
    %v499 = vunpack.c.l.b16 %v415
    %v500 = vunpack.c.h.b16 %v415
    %v501 = vunpack.c.l.b16 %v416
    %v502 = vunpack.c.h.b16 %v416
    %v503 = vunpack.c.l.b16 %v417
    %v504 = vunpack.c.h.b16 %v417
    %v505 = vunpack.c.l.b16 %v418
    %v506 = vunpack.c.h.b16 %v418
    %v507 = vunpack.c.l.b16 %v419
    %v508 = vunpack.c.h.b16 %v419
    %v509 = vunpack.c.l.b16 %v420
    %v510 = vunpack.c.h.b16 %v420
    %v511 = vunpack.c.l.b16 %v421
    %v512 = vunpack.c.h.b16 %v421
    %v513 = vunpack.c.l.b16 %v422
    %v514 = vunpack.c.h.b16 %v422
    %v515 = vunpack.c.l.b16 %v423
    %v516 = vunpack.c.h.b16 %v423
    %v517 = vunpack.c.l.b16 %v424
    %v518 = vunpack.c.h.b16 %v424
    %v519 = vunpack.c.l.b16 %v425
    %v520 = vunpack.c.h.b16 %v425
    %v521 = vunpack.c.l.b16 %v426
    %v522 = vunpack.c.h.b16 %v426
    %v523 = vpack.c.b16 %v463, %v459
    %v524 = vpack.c.b16 %v464, %v460
    %v525 = vpack.c.b16 %v465, %v461
    %v526 = vpack.c.b16 %v466, %v462
    %v527 = vpack.c.b16 %v471, %v467
    %v528 = vpack.c.b16 %v472, %v468
    %v529 = vpack.c.b16 %v473, %v469
    %v530 = vpack.c.b16 %v474, %v470
    %v531 = vpack.c.b16 %v479, %v475
    %v532 = vpack.c.b16 %v480, %v476
    %v533 = vpack.c.b16 %v481, %v477
    %v534 = vpack.c.b16 %v482, %v478
    %v535 = vpack.c.b16 %v487, %v483
    %v536 = vpack.c.b16 %v488, %v484
    %v537 = vpack.c.b16 %v489, %v485
    %v538 = vpack.c.b16 %v490, %v486
    %v539 = vpack.c.b16 %v495, %v491
    %v540 = vpack.c.b16 %v496, %v492
    %v541 = vpack.c.b16 %v497, %v493
    %v542 = vpack.c.b16 %v498, %v494
    %v543 = vpack.c.b16 %v503, %v499
    %v544 = vpack.c.b16 %v504, %v500
    %v545 = vpack.c.b16 %v505, %v501
    %v546 = vpack.c.b16 %v506, %v502
    %v547 = vpack.c.b16 %v511, %v507
    %v548 = vpack.c.b16 %v512, %v508
    %v549 = vpack.c.b16 %v513, %v509
    %v550 = vpack.c.b16 %v514, %v510
    %v551 = vpack.c.b16 %v519, %v515
    %v552 = vpack.c.b16 %v520, %v516
    %v553 = vpack.c.b16 %v521, %v517
    %v554 = vpack.c.b16 %v522, %v518
    %587 = vmatprep.subr.bf16.mxu0 %v552
    %588 = vmatpush1.bf16.msra.mxu0 %v551
    %589 = vmatprep.subr.bf16.mxu0 %v548
    %590 = vmatpush1.bf16.msra.mxu0 %v547
    %591 = vmatprep.subr.bf16.mxu0 %v544
    %592 = vmatpush1.bf16.msra.mxu0 %v543
    %593 = vmatprep.subr.bf16.mxu0 %v540
    %594 = vmatpush1.bf16.msra.mxu0 %v539
    %595 = vmatprep.subr.bf16.mxu0 %v536
    %596 = vmatpush1.bf16.msra.mxu0 %v535
    %597 = vmatprep.subr.bf16.mxu0 %v532
    %598 = vmatpush1.bf16.msra.mxu0 %v531
    %599 = vmatprep.subr.bf16.mxu0 %v528
    %600 = vmatpush1.bf16.msra.mxu0 %v527
    %601 = vmatprep.subr.bf16.mxu0 %v524
    %602 = vmatpush1.bf16.msra.mxu0 %v523
    %603 = vmatprep.subr.bf16.mxu0 0
    %604 = vmatpush2.bf16.msra.mxu0 0
    %605 = vmatprep.subr.bf16.mxu0 0
    %606 = vmatpush2.bf16.msra.mxu0 0
    %607 = vmatprep.subr.bf16.mxu0 0
    %608 = vmatpush2.bf16.msra.mxu0 0
    %609 = vmatprep.subr.bf16.mxu0 0
    %610 = vmatpush2.bf16.msra.mxu0 0
    %611 = vmatprep.subr.bf16.mxu0 0
    %612 = vmatpush2.bf16.msra.mxu0 0
    %613 = vmatprep.subr.bf16.mxu0 0
    %614 = vmatpush2.bf16.msra.mxu0 0
    %615 = vmatprep.subr.bf16.mxu0 0
    %616 = vmatpush2.bf16.msra.mxu0 0
    %617 = vmatprep.subr.bf16.mxu0 0
    %618 = vmatpush2.bf16.msra.mxu0 0
    %619 = vmatprep.mubr.bf16.mxu0 0
    %620 = vmatmul.mubr.bf16.gmra.mxu0 %v394
    %v621 = vpop.f32.mrf.mxu0
    %v622 = vadd.f32 0.0, %v621
    %v623 = vpop.f32.mrf.mxu0
    %v624 = vadd.f32 0.0, %v623
    %v625 = vpop.f32.mrf.mxu0
    %v626 = vadd.f32 0.0, %v625
    %v627 = vpop.f32.mrf.mxu0
    %v628 = vadd.f32 0.0, %v627
    %629 = vdwg.mxu0
    %630 = vmatprep.subr.bf16.mxu0 %v554
    %631 = vmatpush1.bf16.msra.mxu0 %v553
    %632 = vmatprep.subr.bf16.mxu0 %v550
    %633 = vmatpush1.bf16.msra.mxu0 %v549
    %634 = vmatprep.subr.bf16.mxu0 %v546
    %635 = vmatpush1.bf16.msra.mxu0 %v545
    %636 = vmatprep.subr.bf16.mxu0 %v542
    %637 = vmatpush1.bf16.msra.mxu0 %v541
    %638 = vmatprep.subr.bf16.mxu0 %v538
    %639 = vmatpush1.bf16.msra.mxu0 %v537
    %640 = vmatprep.subr.bf16.mxu0 %v534
    %641 = vmatpush1.bf16.msra.mxu0 %v533
    %642 = vmatprep.subr.bf16.mxu0 %v530
    %643 = vmatpush1.bf16.msra.mxu0 %v529
    %644 = vmatprep.subr.bf16.mxu0 %v526
    %645 = vmatpush1.bf16.msra.mxu0 %v525
    %646 = vmatprep.subr.bf16.mxu0 0
    %647 = vmatpush2.bf16.msra.mxu0 0
    %648 = vmatprep.subr.bf16.mxu0 0
    %649 = vmatpush2.bf16.msra.mxu0 0
    %650 = vmatprep.subr.bf16.mxu0 0
    %651 = vmatpush2.bf16.msra.mxu0 0
    %652 = vmatprep.subr.bf16.mxu0 0
    %653 = vmatpush2.bf16.msra.mxu0 0
    %654 = vmatprep.subr.bf16.mxu0 0
    %655 = vmatpush2.bf16.msra.mxu0 0
    %656 = vmatprep.subr.bf16.mxu0 0
    %657 = vmatpush2.bf16.msra.mxu0 0
    %658 = vmatprep.subr.bf16.mxu0 0
    %659 = vmatpush2.bf16.msra.mxu0 0
    %660 = vmatprep.subr.bf16.mxu0 0
    %661 = vmatpush2.bf16.msra.mxu0 0
    %662 = vmatprep.mubr.bf16.mxu0 0
    %663 = vmatmul.mubr.bf16.gmra.mxu0 %v394
    %v664 = vpop.f32.mrf.mxu0
    %v665 = vadd.f32 0.0, %v664
    %v666 = vpop.f32.mrf.mxu0
    %v667 = vadd.f32 0.0, %v666
    %v668 = vpop.f32.mrf.mxu0
    %v669 = vadd.f32 0.0, %v668
    %v670 = vpop.f32.mrf.mxu0
    %v671 = vadd.f32 0.0, %v670
    %672 = vdwg.mxu0
    %674 = vset.pattern.permute.xlu0 4
    %675 = vperm.xlu0 %674, %v392
    %v676 = vpop.permute.xlu0 %675
    %679 = vset.pattern.permute.xlu0 4
    %680 = vperm.xlu0 %679, %v393
    %v681 = vpop.permute.xlu0 %680
    %v683 = vmul.f32 %v389, %v676
    %v684 = vmul.f32 %v390, %v681
    %685 = vset.pattern.permute.xlu0 0
    %686 = vperm.xlu0 %685, %v392
    %v687 = vpop.permute.xlu0 %686
    %689 = vset.pattern.permute.xlu0 0
    %690 = vperm.xlu0 %689, %v393
    %v691 = vpop.permute.xlu0 %690
    %v693 = vmul.f32 %v622, %v687
    %v694 = vmul.f32 %v626, %v691
    %v695 = vadd.f32 %v683, %v693
    %v696 = vadd.f32 %v684, %v694
    %697 = vset.pattern.permute.xlu0 1
    %698 = vperm.xlu0 %697, %v392
    %v699 = vpop.permute.xlu0 %698
    %701 = vset.pattern.permute.xlu0 1
    %702 = vperm.xlu0 %701, %v393
    %v703 = vpop.permute.xlu0 %702
    %v705 = vmul.f32 %v624, %v699
    %v706 = vmul.f32 %v628, %v703
    %v707 = vadd.f32 %v695, %v705
    %v708 = vadd.f32 %v696, %v706
    %709 = vset.pattern.permute.xlu0 2
    %710 = vperm.xlu0 %709, %v392
    %v711 = vpop.permute.xlu0 %710
    %713 = vset.pattern.permute.xlu0 2
    %714 = vperm.xlu0 %713, %v393
    %v715 = vpop.permute.xlu0 %714
    %v717 = vmul.f32 %v665, %v711
    %v718 = vmul.f32 %v669, %v715
    %v719 = vadd.f32 %v707, %v717
    %v720 = vadd.f32 %v708, %v718
    %721 = vset.pattern.permute.xlu0 3
    %722 = vperm.xlu0 %721, %v392
    %v723 = vpop.permute.xlu0 %722
    %725 = vset.pattern.permute.xlu0 3
    %726 = vperm.xlu0 %725, %v393
    %v727 = vpop.permute.xlu0 %726
    %v729 = vmul.f32 %v667, %v723
    %v730 = vmul.f32 %v671, %v727
    %v731 = vadd.f32 %v719, %v729
    %v732 = vadd.f32 %v720, %v730
    %733 = vadd.xlane.f32.xlu0 %v731
    %v734 = vpop.xlane.xlu0 %733
    %735 = vadd.xlane.f32.xlu0 %v732
    %v736 = vpop.xlane.xlu0 %735
    %v737 = vmax.f32 %v734, 1e-20
    %v738 = vmax.f32 %v736, 1e-20
    %v739 = vrcp.pop %v737
    %v740 = vmul.f32 %v731, %v739
    %v741 = vrcp.pop %v738
    %v742 = vmul.f32 %v732, %v741
    %743 = vst [vmem:[#allocation5] sm:$0xff] %v740
    %744 = vst [vmem:[#allocation5 + $0x8] sm:$0xff] %v742
    %v745 = vld [vmem:[#allocation5] sm:$0xff]
    %v746 = vld [vmem:[#allocation5 + $0x8] sm:$0xff]
    %s747 = scalar_lea.vmem %s2, 32
    %v748 = vld [vmem:[%s747] sm:$0xff]
    %v749 = vld [vmem:[%s747 + $0x8] sm:$0xff]
    %v750 = vpack.c.bf16 %v746, %v745
    %v751 = vld [vmem:[#allocation2] sm:$0xff]
    %v752 = vld [vmem:[#allocation2 + $0x8] sm:$0xff]
    %v753 = vld [vmem:[#allocation2 + $0x10] sm:$0xff]
    %v754 = vld [vmem:[#allocation2 + $0x18] sm:$0xff]
    %v755 = vld [vmem:[#allocation2 + $0x20] sm:$0xff]
    %v756 = vld [vmem:[#allocation2 + $0x28] sm:$0xff]
    %v757 = vld [vmem:[#allocation2 + $0x30] sm:$0xff]
    %v758 = vld [vmem:[#allocation2 + $0x38] sm:$0xff]
    %v759 = vld [vmem:[#allocation2 + $0x40] sm:$0xff]
    %v760 = vld [vmem:[#allocation2 + $0x48] sm:$0xff]
    %v761 = vld [vmem:[#allocation2 + $0x50] sm:$0xff]
    %v762 = vld [vmem:[#allocation2 + $0x58] sm:$0xff]
    %v763 = vld [vmem:[#allocation2 + $0x60] sm:$0xff]
    %v764 = vld [vmem:[#allocation2 + $0x68] sm:$0xff]
    %v765 = vld [vmem:[#allocation2 + $0x70] sm:$0xff]
    %v766 = vld [vmem:[#allocation2 + $0x78] sm:$0xff]
    %v767 = vld [vmem:[#allocation2 + $0x80] sm:$0xff]
    %v768 = vld [vmem:[#allocation2 + $0x88] sm:$0xff]
    %v769 = vld [vmem:[#allocation2 + $0x90] sm:$0xff]
    %v770 = vld [vmem:[#allocation2 + $0x98] sm:$0xff]
    %v771 = vld [vmem:[#allocation2 + $0xa0] sm:$0xff]
    %v772 = vld [vmem:[#allocation2 + $0xa8] sm:$0xff]
    %v773 = vld [vmem:[#allocation2 + $0xb0] sm:$0xff]
    %v774 = vld [vmem:[#allocation2 + $0xb8] sm:$0xff]
    %v775 = vld [vmem:[#allocation2 + $0xc0] sm:$0xff]
    %v776 = vld [vmem:[#allocation2 + $0xc8] sm:$0xff]
    %v777 = vld [vmem:[#allocation2 + $0xd0] sm:$0xff]
    %v778 = vld [vmem:[#allocation2 + $0xd8] sm:$0xff]
    %v779 = vld [vmem:[#allocation2 + $0xe0] sm:$0xff]
    %v780 = vld [vmem:[#allocation2 + $0xe8] sm:$0xff]
    %v781 = vld [vmem:[#allocation2 + $0xf0] sm:$0xff]
    %v782 = vld [vmem:[#allocation2 + $0xf8] sm:$0xff]
    %v815 = vunpack.c.l.b16 %v751
    %v816 = vunpack.c.h.b16 %v751
    %v817 = vunpack.c.l.b16 %v752
    %v818 = vunpack.c.h.b16 %v752
    %v819 = vunpack.c.l.b16 %v753
    %v820 = vunpack.c.h.b16 %v753
    %v821 = vunpack.c.l.b16 %v754
    %v822 = vunpack.c.h.b16 %v754
    %v823 = vunpack.c.l.b16 %v755
    %v824 = vunpack.c.h.b16 %v755
    %v825 = vunpack.c.l.b16 %v756
    %v826 = vunpack.c.h.b16 %v756
    %v827 = vunpack.c.l.b16 %v757
    %v828 = vunpack.c.h.b16 %v757
    %v829 = vunpack.c.l.b16 %v758
    %v830 = vunpack.c.h.b16 %v758
    %v831 = vunpack.c.l.b16 %v759
    %v832 = vunpack.c.h.b16 %v759
    %v833 = vunpack.c.l.b16 %v760
    %v834 = vunpack.c.h.b16 %v760
    %v835 = vunpack.c.l.b16 %v761
    %v836 = vunpack.c.h.b16 %v761
    %v837 = vunpack.c.l.b16 %v762
    %v838 = vunpack.c.h.b16 %v762
    %v839 = vunpack.c.l.b16 %v763
    %v840 = vunpack.c.h.b16 %v763
    %v841 = vunpack.c.l.b16 %v764
    %v842 = vunpack.c.h.b16 %v764
    %v843 = vunpack.c.l.b16 %v765
    %v844 = vunpack.c.h.b16 %v765
    %v845 = vunpack.c.l.b16 %v766
    %v846 = vunpack.c.h.b16 %v766
    %v847 = vunpack.c.l.b16 %v767
    %v848 = vunpack.c.h.b16 %v767
    %v849 = vunpack.c.l.b16 %v768
    %v850 = vunpack.c.h.b16 %v768
    %v851 = vunpack.c.l.b16 %v769
    %v852 = vunpack.c.h.b16 %v769
    %v853 = vunpack.c.l.b16 %v770
    %v854 = vunpack.c.h.b16 %v770
    %v855 = vunpack.c.l.b16 %v771
    %v856 = vunpack.c.h.b16 %v771
    %v857 = vunpack.c.l.b16 %v772
    %v858 = vunpack.c.h.b16 %v772
    %v859 = vunpack.c.l.b16 %v773
    %v860 = vunpack.c.h.b16 %v773
    %v861 = vunpack.c.l.b16 %v774
    %v862 = vunpack.c.h.b16 %v774
    %v863 = vunpack.c.l.b16 %v775
    %v864 = vunpack.c.h.b16 %v775
    %v865 = vunpack.c.l.b16 %v776
    %v866 = vunpack.c.h.b16 %v776
    %v867 = vunpack.c.l.b16 %v777
    %v868 = vunpack.c.h.b16 %v777
    %v869 = vunpack.c.l.b16 %v778
    %v870 = vunpack.c.h.b16 %v778
    %v871 = vunpack.c.l.b16 %v779
    %v872 = vunpack.c.h.b16 %v779
    %v873 = vunpack.c.l.b16 %v780
    %v874 = vunpack.c.h.b16 %v780
    %v875 = vunpack.c.l.b16 %v781
    %v876 = vunpack.c.h.b16 %v781
    %v877 = vunpack.c.l.b16 %v782
    %v878 = vunpack.c.h.b16 %v782
    %v879 = vpack.c.b16 %v819, %v815
    %v880 = vpack.c.b16 %v820, %v816
    %v881 = vpack.c.b16 %v821, %v817
    %v882 = vpack.c.b16 %v822, %v818
    %v883 = vpack.c.b16 %v827, %v823
    %v884 = vpack.c.b16 %v828, %v824
    %v885 = vpack.c.b16 %v829, %v825
    %v886 = vpack.c.b16 %v830, %v826
    %v887 = vpack.c.b16 %v835, %v831
    %v888 = vpack.c.b16 %v836, %v832
    %v889 = vpack.c.b16 %v837, %v833
    %v890 = vpack.c.b16 %v838, %v834
    %v891 = vpack.c.b16 %v843, %v839
    %v892 = vpack.c.b16 %v844, %v840
    %v893 = vpack.c.b16 %v845, %v841
    %v894 = vpack.c.b16 %v846, %v842
    %v895 = vpack.c.b16 %v851, %v847
    %v896 = vpack.c.b16 %v852, %v848
    %v897 = vpack.c.b16 %v853, %v849
    %v898 = vpack.c.b16 %v854, %v850
    %v899 = vpack.c.b16 %v859, %v855
    %v900 = vpack.c.b16 %v860, %v856
    %v901 = vpack.c.b16 %v861, %v857
    %v902 = vpack.c.b16 %v862, %v858
    %v903 = vpack.c.b16 %v867, %v863
    %v904 = vpack.c.b16 %v868, %v864
    %v905 = vpack.c.b16 %v869, %v865
    %v906 = vpack.c.b16 %v870, %v866
    %v907 = vpack.c.b16 %v875, %v871
    %v908 = vpack.c.b16 %v876, %v872
    %v909 = vpack.c.b16 %v877, %v873
    %v910 = vpack.c.b16 %v878, %v874
    %943 = vmatprep.subr.bf16.mxu0 %v908
    %944 = vmatpush1.bf16.msra.mxu0 %v907
    %945 = vmatprep.subr.bf16.mxu0 %v904
    %946 = vmatpush1.bf16.msra.mxu0 %v903
    %947 = vmatprep.subr.bf16.mxu0 %v900
    %948 = vmatpush1.bf16.msra.mxu0 %v899
    %949 = vmatprep.subr.bf16.mxu0 %v896
    %950 = vmatpush1.bf16.msra.mxu0 %v895
    %951 = vmatprep.subr.bf16.mxu0 %v892
    %952 = vmatpush1.bf16.msra.mxu0 %v891
    %953 = vmatprep.subr.bf16.mxu0 %v888
    %954 = vmatpush1.bf16.msra.mxu0 %v887
    %955 = vmatprep.subr.bf16.mxu0 %v884
    %956 = vmatpush1.bf16.msra.mxu0 %v883
    %957 = vmatprep.subr.bf16.mxu0 %v880
    %958 = vmatpush1.bf16.msra.mxu0 %v879
    %959 = vmatprep.subr.bf16.mxu0 0
    %960 = vmatpush2.bf16.msra.mxu0 0
    %961 = vmatprep.subr.bf16.mxu0 0
    %962 = vmatpush2.bf16.msra.mxu0 0
    %963 = vmatprep.subr.bf16.mxu0 0
    %964 = vmatpush2.bf16.msra.mxu0 0
    %965 = vmatprep.subr.bf16.mxu0 0
    %966 = vmatpush2.bf16.msra.mxu0 0
    %967 = vmatprep.subr.bf16.mxu0 0
    %968 = vmatpush2.bf16.msra.mxu0 0
    %969 = vmatprep.subr.bf16.mxu0 0
    %970 = vmatpush2.bf16.msra.mxu0 0
    %971 = vmatprep.subr.bf16.mxu0 0
    %972 = vmatpush2.bf16.msra.mxu0 0
    %973 = vmatprep.subr.bf16.mxu0 0
    %974 = vmatpush2.bf16.msra.mxu0 0
    %975 = vmatprep.mubr.bf16.mxu0 0
    %976 = vmatmul.mubr.bf16.gmra.mxu0 %v750
    %v977 = vpop.f32.mrf.mxu0
    %v978 = vadd.f32 0.0, %v977
    %v979 = vpop.f32.mrf.mxu0
    %v980 = vadd.f32 0.0, %v979
    %v981 = vpop.f32.mrf.mxu0
    %v982 = vadd.f32 0.0, %v981
    %v983 = vpop.f32.mrf.mxu0
    %v984 = vadd.f32 0.0, %v983
    %985 = vdwg.mxu0
    %986 = vmatprep.subr.bf16.mxu0 %v910
    %987 = vmatpush1.bf16.msra.mxu0 %v909
    %988 = vmatprep.subr.bf16.mxu0 %v906
    %989 = vmatpush1.bf16.msra.mxu0 %v905
    %990 = vmatprep.subr.bf16.mxu0 %v902
    %991 = vmatpush1.bf16.msra.mxu0 %v901
    %992 = vmatprep.subr.bf16.mxu0 %v898
    %993 = vmatpush1.bf16.msra.mxu0 %v897
    %994 = vmatprep.subr.bf16.mxu0 %v894
    %995 = vmatpush1.bf16.msra.mxu0 %v893
    %996 = vmatprep.subr.bf16.mxu0 %v890
    %997 = vmatpush1.bf16.msra.mxu0 %v889
    %998 = vmatprep.subr.bf16.mxu0 %v886
    %999 = vmatpush1.bf16.msra.mxu0 %v885
    %1000 = vmatprep.subr.bf16.mxu0 %v882
    %1001 = vmatpush1.bf16.msra.mxu0 %v881
    %1002 = vmatprep.subr.bf16.mxu0 0
    %1003 = vmatpush2.bf16.msra.mxu0 0
    %1004 = vmatprep.subr.bf16.mxu0 0
    %1005 = vmatpush2.bf16.msra.mxu0 0
    %1006 = vmatprep.subr.bf16.mxu0 0
    %1007 = vmatpush2.bf16.msra.mxu0 0
    %1008 = vmatprep.subr.bf16.mxu0 0
    %1009 = vmatpush2.bf16.msra.mxu0 0
    %1010 = vmatprep.subr.bf16.mxu0 0
    %1011 = vmatpush2.bf16.msra.mxu0 0
    %1012 = vmatprep.subr.bf16.mxu0 0
    %1013 = vmatpush2.bf16.msra.mxu0 0
    %1014 = vmatprep.subr.bf16.mxu0 0
    %1015 = vmatpush2.bf16.msra.mxu0 0
    %1016 = vmatprep.subr.bf16.mxu0 0
    %1017 = vmatpush2.bf16.msra.mxu0 0
    %1018 = vmatprep.mubr.bf16.mxu0 0
    %1019 = vmatmul.mubr.bf16.gmra.mxu0 %v750
    %v1020 = vpop.f32.mrf.mxu0
    %v1021 = vadd.f32 0.0, %v1020
    %v1022 = vpop.f32.mrf.mxu0
    %v1023 = vadd.f32 0.0, %v1022
    %v1024 = vpop.f32.mrf.mxu0
    %v1025 = vadd.f32 0.0, %v1024
    %v1026 = vpop.f32.mrf.mxu0
    %v1027 = vadd.f32 0.0, %v1026
    %1028 = vdwg.mxu0
    %1030 = vset.pattern.permute.xlu0 4
    %1031 = vperm.xlu0 %1030, %v748
    %v1032 = vpop.permute.xlu0 %1031
    %1035 = vset.pattern.permute.xlu0 4
    %1036 = vperm.xlu0 %1035, %v749
    %v1037 = vpop.permute.xlu0 %1036
    %v1039 = vmul.f32 %v745, %v1032
    %v1040 = vmul.f32 %v746, %v1037
    %1041 = vset.pattern.permute.xlu0 0
    %1042 = vperm.xlu0 %1041, %v748
    %v1043 = vpop.permute.xlu0 %1042
    %1045 = vset.pattern.permute.xlu0 0
    %1046 = vperm.xlu0 %1045, %v749
    %v1047 = vpop.permute.xlu0 %1046
    %v1049 = vmul.f32 %v978, %v1043
    %v1050 = vmul.f32 %v982, %v1047
    %v1051 = vadd.f32 %v1039, %v1049
    %v1052 = vadd.f32 %v1040, %v1050
    %1053 = vset.pattern.permute.xlu0 1
    %1054 = vperm.xlu0 %1053, %v748
    %v1055 = vpop.permute.xlu0 %1054
    %1057 = vset.pattern.permute.xlu0 1
    %1058 = vperm.xlu0 %1057, %v749
    %v1059 = vpop.permute.xlu0 %1058
    %v1061 = vmul.f32 %v980, %v1055
    %v1062 = vmul.f32 %v984, %v1059
    %v1063 = vadd.f32 %v1051, %v1061
    %v1064 = vadd.f32 %v1052, %v1062
    %1065 = vset.pattern.permute.xlu0 2
    %1066 = vperm.xlu0 %1065, %v748
    %v1067 = vpop.permute.xlu0 %1066
    %1069 = vset.pattern.permute.xlu0 2
    %1070 = vperm.xlu0 %1069, %v749
    %v1071 = vpop.permute.xlu0 %1070
    %v1073 = vmul.f32 %v1021, %v1067
    %v1074 = vmul.f32 %v1025, %v1071
    %v1075 = vadd.f32 %v1063, %v1073
    %v1076 = vadd.f32 %v1064, %v1074
    %1077 = vset.pattern.permute.xlu0 3
    %1078 = vperm.xlu0 %1077, %v748
    %v1079 = vpop.permute.xlu0 %1078
    %1081 = vset.pattern.permute.xlu0 3
    %1082 = vperm.xlu0 %1081, %v749
    %v1083 = vpop.permute.xlu0 %1082
    %v1085 = vmul.f32 %v1023, %v1079
    %v1086 = vmul.f32 %v1027, %v1083
    %v1087 = vadd.f32 %v1075, %v1085
    %v1088 = vadd.f32 %v1076, %v1086
    %1089 = vadd.xlane.f32.xlu0 %v1087
    %v1090 = vpop.xlane.xlu0 %1089
    %1091 = vadd.xlane.f32.xlu0 %v1088
    %v1092 = vpop.xlane.xlu0 %1091
    %v1093 = vmax.f32 %v1090, 1e-20
    %v1094 = vmax.f32 %v1092, 1e-20
    %v1095 = vrcp.pop %v1093
    %v1096 = vmul.f32 %v1087, %v1095
    %v1097 = vrcp.pop %v1094
    %v1098 = vmul.f32 %v1088, %v1097
    %1099 = vst [vmem:[#allocation5] sm:$0xff] %v1096
    %1100 = vst [vmem:[#allocation5 + $0x8] sm:$0xff] %v1098
    // Predicated region
    $region18: #{tpu_custom_call.1} parent=1 // pred_check
      _
    $region19: #{tpu_custom_call.1} parent=1 // pred_check_branch
      %1102 = sbr.rel (0) target = $region21
    $region20: #{tpu_custom_call.1} parent=1 // pred_region
      %s1104 = ssub.s32 256, 256
      %1105 = vsyncadd [#allocation4], %s1104
      %s1106 = sshll.u32 [#allocation5], 4
      %s1107 = int_to_ptr.vmem [resolvable:$true] %s1106
      %1112 = dma.vmem_to_hbm [thread:$0]  %s1107, 256, %s3, [#allocation4], 128, 128, 8
    $region21: #{tpu_custom_call.1} parent=1 // pred_fallthru
      _
    // Predicated region
    $region22: #{tpu_custom_call.1} parent=1 // pred_check
      _
    $region23: #{tpu_custom_call.1} parent=1 // pred_check_branch
      %1114 = sbr.rel (0) target = $region25
    $region24: #{tpu_custom_call.1} parent=1 // pred_region
      %1115 = dma.done [#allocation4], 256
    $region25: #{tpu_custom_call.1} parent=1 // pred_fallthru
      _
    %1116 = vsyncpa [#allocation3], 1
    %1117 = vsyncpa [#allocation4], 1

</llo_original>
